<compile_context>
chip_gen: v7x
topology: tpu7x:2x2x1
jax: 0.10.0
libtpu: 0.0.40
codegen_flags: <defaults>
</compile_context>

<pallas_src>
import jax
import jax.numpy as jnp
from jax.experimental import pallas as pl
from jax.experimental.pallas import tpu as pltpu

_LANES = 128
_SUB = 8          # f32 sublane tile
_ROW_ALIGN = 16   # row-tile alignment (also bf16 sublane-packing friendly)
_TM_MAX = 4096    # 4096 * 128 * 4 B = 2 MiB per f32 input block
_CHUNK = 512      # in-kernel accumulation sub-chunk (rows)
_MIN_STEPS = 4    # aim for >= 4 grid steps so v7x's 2 TCs each get >= 2


def _round_up(x: int, m: int) -> int:
    return ((x + m - 1) // m) * m


def _make_kernel(tm: int, chunk: int, rows: int, grid_n: int):
    """Kernel for a (rows, 128) slab tiled into (tm, 128) blocks."""
    n_chunks = tm // chunk
    ragged = (rows % tm) != 0  # only the last block can be partially out of bounds

    def _accumulate(pred_ref, gt_ref, valid_rows):
        # valid_rows: None -> every row of this block is in bounds (fast path);
        # otherwise a traced scalar = number of in-bounds rows in this block.
        def body(c, carry):
            s_acc, c_acc = carry
            r = pl.multiple_of(c * chunk, chunk)
            gt = gt_ref[pl.ds(r, chunk), :].astype(jnp.float32)
            pr = pred_ref[pl.ds(r, chunk), :].astype(jnp.float32)
            valid = gt != 0.0
            if valid_rows is not None:
                rid = r + jax.lax.broadcasted_iota(jnp.int32, (chunk, _LANES), 0)
                valid = valid & (rid < valid_rows)
            # Single select; inf/NaN from the zero/garbage denominator is discarded.
            rel = jnp.where(valid, jnp.abs(pr - gt) / gt, 0.0)
            one = jnp.where(valid, 1.0, 0.0)
            # Fold (chunk,128) down onto the (8,128) accumulators: pure VALU adds.
            s_acc = s_acc + rel.reshape(chunk // _SUB, _SUB, _LANES).sum(axis=0)
            c_acc = c_acc + one.reshape(chunk // _SUB, _SUB, _LANES).sum(axis=0)
            return s_acc, c_acc

        zero = jnp.zeros((_SUB, _LANES), jnp.float32)
        return jax.lax.fori_loop(0, n_chunks, body, (zero, zero), unroll=True)

    def kernel(pred_ref, gt_ref, out_ref):
        if not ragged:
            s, c = _accumulate(pred_ref, gt_ref, None)
            out_ref[0, 0, :, :] = s
            out_ref[0, 1, :, :] = c
        else:
            i = pl.program_id(0)
            is_last = i == (grid_n - 1)

            @pl.when(jnp.logical_not(is_last))
            def _():
                s, c = _accumulate(pred_ref, gt_ref, None)
                out_ref[0, 0, :, :] = s
                out_ref[0, 1, :, :] = c

            @pl.when(is_last)
            def _():
                valid_rows = rows - i * tm
                s, c = _accumulate(pred_ref, gt_ref, valid_rows)
                out_ref[0, 0, :, :] = s
                out_ref[0, 1, :, :] = c

    return kernel


def masked_average_relative_error(pred: jax.Array, gt: jax.Array) -> jax.Array:
    assert pred.shape == gt.shape and pred.ndim == 4
    N, C, H, W = pred.shape
    total = N * C * H * W

    p_flat = pred.reshape(-1)  # free bitcast
    g_flat = gt.reshape(-1)

    rows = total // _LANES
    kernel_rows = rows if rows >= _ROW_ALIGN else 0  # tiny inputs: pure jnp path
    kernel_elems = kernel_rows * _LANES

    total_sum = jnp.float32(0.0)
    total_cnt = jnp.float32(0.0)

    if kernel_rows:
        # Row tile: >= _MIN_STEPS steps when possible (v7x megacore), capped at
        # 2 MiB blocks; multiple of _CHUNK when larger than one chunk so the
        # in-kernel fori_loop divides evenly.  Guaranteed tm <= kernel_rows.
        tm = min(_TM_MAX, _round_up(pl.cdiv(kernel_rows, _MIN_STEPS), _ROW_ALIGN))
        if tm > _CHUNK:
            tm = min(_TM_MAX, _round_up(tm, _CHUNK))
        chunk = min(tm, _CHUNK)
        grid_n = pl.cdiv(kernel_rows, tm)

        if kernel_elems == total:
            p_main, g_main = p_flat, g_flat  # common case: free reshape, no copy
        else:
            # Rare (total not a multiple of 128): prefix slice costs one copy.
            p_main = p_flat[:kernel_elems]
            g_main = g_flat[:kernel_elems]
        p2 = p_main.reshape(kernel_rows, _LANES)
        g2 = g_main.reshape(kernel_rows, _LANES)

        partials = pl.pallas_call(
            _make_kernel(tm, chunk, kernel_rows, grid_n),
            out_shape=jax.ShapeDtypeStruct((grid_n, 2, _SUB, _LANES), jnp.float32),
            grid_spec=pltpu.PrefetchScalarGridSpec(
                num_scalar_prefetch=0,
                grid=(grid_n,),
                in_specs=[
                    pl.BlockSpec((tm, _LANES), lambda i: (i, 0)),
                    pl.BlockSpec((tm, _LANES), lambda i: (i, 0)),
                ],
                out_specs=pl.BlockSpec((1, 2, _SUB, _LANES), lambda i: (i, 0, 0, 0)),
            ),
            compiler_params=pltpu.CompilerParams(
                dimension_semantics=("parallel",),  # disjoint output blocks
            ),
        )(p2, g2)

        total_sum = jnp.sum(partials[:, 0])
        total_cnt = jnp.sum(partials[:, 1])

    if kernel_elems < total:
        # Remainder handled in plain jnp: either a < 128-element lane tail or a
        # tiny (< 2048 element) input that isn't worth a kernel launch.
        g_t = g_flat[kernel_elems:].astype(jnp.float32)
        p_t = p_flat[kernel_elems:].astype(jnp.float32)
        m_t = g_t != 0.0
        total_sum = total_sum + jnp.sum(
            jnp.where(m_t, jnp.abs(p_t - g_t) / jnp.where(m_t, g_t, 1.0), 0.0)
        )
        total_cnt = total_cnt + jnp.sum(m_t).astype(jnp.float32)

    # mean over (N, C) of per-(n, c) spatial sums / valid_points
    return total_sum / (total_cnt * jnp.float32(N * C))


def _reference(pred, gt):
    mask = gt != 0
    valid_points = mask.sum()
    gt_s = jnp.where(mask, gt, 1.0)
    pred_s = jnp.where(mask, pred, 1.0)
    return ((jnp.abs(pred_s - gt_s) / gt_s).sum((2, 3)) / valid_points).mean()


if __name__ == "__main__":
    key = jax.random.PRNGKey(0)
    k1, k2, k3 = jax.random.split(key, 3)

    N, C, H, W = 2, 4, 16, 16
    # Ground-truth depth: positive values with ~30% zeros (invalid pixels).
    gt_vals = jax.random.uniform(k1, (N, C, H, W), jnp.float32, 0.5, 5.0)
    zero_mask = jax.random.uniform(k2, (N, C, H, W)) < 0.3
    gt = jnp.where(zero_mask, 0.0, gt_vals)
    pred = gt_vals + 0.1 * jax.random.normal(k3, (N, C, H, W), jnp.float32)

    result = masked_average_relative_error(pred, gt)
    result = jax.block_until_ready(result)

    ref = _reference(pred, gt)
    assert jnp.allclose(result, ref, rtol=1e-5, atol=1e-6), (result, ref)

    print("KERNEL_OK")
</pallas_src>

<mosaic_0001>
module attributes {stable_mosaic.version = 11 : i64} {
  func.func @kernel(%arg0: i32, %arg1: memref<16x128xf32, #tpu.memory_space<vmem>>, %arg2: memref<16x128xf32, #tpu.memory_space<vmem>>, %arg3: memref<1x2x8x128xf32, #tpu.memory_space<vmem>>) attributes {dimension_semantics = [#tpu.dimension_semantics<parallel>], iteration_bounds = array<i64: 1>, scalar_prefetch = 0 : i64, scratch_operands = 0 : i64, tpu.core_type = #tpu.core_type<tc>, window_params = [{transform_indices = @transform_0, window_bounds = array<i64: 16, 128>}, {transform_indices = @transform_1, window_bounds = array<i64: 16, 128>}, {transform_indices = @transform_2, window_bounds = array<i64: 1, 2, 8, 128>}]} {
    %cst = arith.constant 0.000000e+00 : f32
    %0 = vector.broadcast %cst : f32 to vector<8x128xf32>
    %c0_i32 = arith.constant 0 : i32
    %c16_i32 = arith.constant 16 : i32
    %1 = arith.muli %c0_i32, %c16_i32 : i32
    %2 = tpu.assume_multiple %1, 16 : i32
    %3 = arith.index_cast %2 : i32 to index
    %c0 = arith.constant 0 : index
    %4 = vector.load %arg2[%3, %c0] : memref<16x128xf32, #tpu.memory_space<vmem>>, vector<16x128xf32>
    %5 = arith.index_cast %2 : i32 to index
    %c0_0 = arith.constant 0 : index
    %6 = vector.load %arg1[%5, %c0_0] : memref<16x128xf32, #tpu.memory_space<vmem>>, vector<16x128xf32>
    %cst_1 = arith.constant 0.000000e+00 : f32
    %7 = vector.broadcast %cst_1 : f32 to vector<16x128xf32>
    %8 = arith.cmpf one, %4, %7 : vector<16x128xf32>
    %9 = arith.subf %6, %4 : vector<16x128xf32>
    %10 = math.absf %9 : vector<16x128xf32>
    %11 = arith.divf %10, %4 : vector<16x128xf32>
    %cst_2 = arith.constant 0.000000e+00 : f32
    %12 = vector.broadcast %cst_2 : f32 to vector<16x128xf32>
    %13 = arith.select %8, %11, %12 : vector<16x128xi1>, vector<16x128xf32>
    %cst_3 = arith.constant 1.000000e+00 : f32
    %cst_4 = arith.constant 0.000000e+00 : f32
    %14 = vector.broadcast %cst_3 : f32 to vector<16x128xf32>
    %15 = vector.broadcast %cst_4 : f32 to vector<16x128xf32>
    %16 = arith.select %8, %14, %15 : vector<16x128xi1>, vector<16x128xf32>
    %17 = vector.shape_cast %13 : vector<16x128xf32> to vector<2x8x128xf32>
    %cst_5 = arith.constant dense<0.000000e+00> : vector<8x128xf32>
    %18 = vector.multi_reduction <add>, %17, %cst_5 [0] : vector<2x8x128xf32> to vector<8x128xf32>
    %19 = arith.addf %0, %18 : vector<8x128xf32>
    %20 = vector.shape_cast %16 : vector<16x128xf32> to vector<2x8x128xf32>
    %cst_6 = arith.constant dense<0.000000e+00> : vector<8x128xf32>
    %21 = vector.multi_reduction <add>, %20, %cst_6 [0] : vector<2x8x128xf32> to vector<8x128xf32>
    %22 = arith.addf %0, %21 : vector<8x128xf32>
    %c1_i32 = arith.constant 1 : i32
    %c0_7 = arith.constant 0 : index
    %c0_8 = arith.constant 0 : index
    %c0_9 = arith.constant 0 : index
    %c0_10 = arith.constant 0 : index
    %23 = vector.load %arg3[%c0_7, %c0_8, %c0_9, %c0_10] : memref<1x2x8x128xf32, #tpu.memory_space<vmem>>, vector<1x1x8x128xf32>
    %24 = vector.shape_cast %23 : vector<1x1x8x128xf32> to vector<8x128xf32>
    %25 = vector.shape_cast %19 : vector<8x128xf32> to vector<1x1x8x128xf32>
    tpu.vector_store %arg3[%c0_7, %c0_8, %c0_9, %c0_10], %25 {strides = array<i32>} : memref<1x2x8x128xf32, #tpu.memory_space<vmem>>, vector<1x1x8x128xf32>,
    %c0_11 = arith.constant 0 : index
    %c1 = arith.constant 1 : index
    %c0_12 = arith.constant 0 : index
    %c0_13 = arith.constant 0 : index
    %26 = vector.load %arg3[%c0_11, %c1, %c0_12, %c0_13] : memref<1x2x8x128xf32, #tpu.memory_space<vmem>>, vector<1x1x8x128xf32>
    %27 = vector.shape_cast %26 : vector<1x1x8x128xf32> to vector<8x128xf32>
    %28 = vector.shape_cast %22 : vector<8x128xf32> to vector<1x1x8x128xf32>
    tpu.vector_store %arg3[%c0_11, %c1, %c0_12, %c0_13], %28 {strides = array<i32>} : memref<1x2x8x128xf32, #tpu.memory_space<vmem>>, vector<1x1x8x128xf32>,
    return
  }
  func.func @transform_0(%arg0: i32) -> (i32, i32) {
    %c0_i32 = arith.constant 0 : i32
    %c0_i32_0 = arith.constant 0 : i32
    return %arg0, %c0_i32 : i32, i32
  }
  func.func @transform_1(%arg0: i32) -> (i32, i32) {
    %c0_i32 = arith.constant 0 : i32
    %c0_i32_0 = arith.constant 0 : i32
    return %arg0, %c0_i32 : i32, i32
  }
  func.func @transform_2(%arg0: i32) -> (i32, i32, i32, i32) {
    %c0_i32 = arith.constant 0 : i32
    %c0_i32_0 = arith.constant 0 : i32
    %c0_i32_1 = arith.constant 0 : i32
    %c0_i32_2 = arith.constant 0 : i32
    return %arg0, %c0_i32, %c0_i32_0, %c0_i32_1 : i32, i32, i32, i32
  }
}

</mosaic_0001>

<llo_original>
// kernel: tpu_custom_call.1
$region0: #{tpu_custom_call.1}
  #allocation0 [shape = 'u32[]', space=smem, size = 0x4, offset = 0x4, fixed_abs, tag = 'smem constant byte address 0x4 - core index']
  #allocation1 [shape = 'u32[144,128]{1,0:T(1,128)}', space=vmem, size = 0x12000, scoped, tag = 'internal scratch']
  %s0 = inlined_call_operand.hbm [shape: f32[16,128], index: 0, kind: input, shape index: {}]
  %s1 = inlined_call_operand.hbm [shape: f32[16,128], index: 1, kind: input, shape index: {}]
  %s2 = inlined_call_operand.hbm [shape: f32[1,2,8,128], index: 2, kind: output, shape index: {}]
  %s3 = sld [smem:[#allocation0]]
  $region26: #{tpu_custom_call.1} parent=0
    _
  %s5 = ssub.s32 1, %s3
  %s6 = scalar_select 0, %s5, %s3
  $region1: #{tpu_custom_call.1} parent=0
    #allocation2 [shape = 'u8[8192]{0}', space=vmem, size = 0x2000, scoped, tag = 'input window, operand 0, single buffered']
    #allocation3 [shape = 's32[1]{0}', space=sflag, size = 0x4, scoped, tag = 'scoped memory for tpu_custom_call.1']
    #allocation4 [shape = 's32[1]{0}', space=sflag, size = 0x4, scoped, tag = 'scoped memory for tpu_custom_call.1']
    #allocation5 [shape = 'u8[8192]{0}', space=vmem, size = 0x2000, scoped, tag = 'input window, operand 1, single buffered']
    #allocation6 [shape = 's32[1]{0}', space=sflag, size = 0x4, scoped, tag = 'scoped memory for tpu_custom_call.1']
    #allocation7 [shape = 'u8[8192]{0}', space=vmem, size = 0x2000, scoped, tag = 'output window, operand 0, single buffered']
    %7 = vsyncpa [#allocation3], 0
    %8 = vsyncpa [#allocation6], 0
    %9 = vsyncpa [#allocation4], 0
    // Predicated region
    $region2: #{tpu_custom_call.1} parent=1 // pred_check
      _
    $region3: #{tpu_custom_call.1} parent=1 // pred_check_branch
      %11 = sbr.rel (0) target = $region5
    $region4: #{tpu_custom_call.1} parent=1 // pred_region
      %s13 = ssub.s32 256, 256
      %14 = vsyncadd [#allocation3], %s13
      %s15 = sshll.u32 [#allocation2], 4
      %s16 = int_to_ptr.vmem [resolvable:$true] %s15
      %21 = dma.hbm_to_vmem [thread:$0]  %s0, 256, %s16, [#allocation3], 128, 128, 8
    $region5: #{tpu_custom_call.1} parent=1 // pred_fallthru
      _
    // Predicated region
    $region6: #{tpu_custom_call.1} parent=1 // pred_check
      _
    $region7: #{tpu_custom_call.1} parent=1 // pred_check_branch
      %23 = sbr.rel (0) target = $region9
    $region8: #{tpu_custom_call.1} parent=1 // pred_region
      %s25 = ssub.s32 256, 256
      %26 = vsyncadd [#allocation6], %s25
      %s27 = sshll.u32 [#allocation5], 4
      %s28 = int_to_ptr.vmem [resolvable:$true] %s27
      %33 = dma.hbm_to_vmem [thread:$0]  %s1, 256, %s28, [#allocation6], 128, 128, 8
    $region9: #{tpu_custom_call.1} parent=1 // pred_fallthru
      _
    // Predicated region
    $region10: #{tpu_custom_call.1} parent=1 // pred_check
      _
    $region11: #{tpu_custom_call.1} parent=1 // pred_check_branch
      %35 = sbr.rel (0) target = $region13
    $region12: #{tpu_custom_call.1} parent=1 // pred_region
      %36 = dma.done [#allocation3], 256
    $region13: #{tpu_custom_call.1} parent=1 // pred_fallthru
      _
    // Predicated region
    $region14: #{tpu_custom_call.1} parent=1 // pred_check
      _
    $region15: #{tpu_custom_call.1} parent=1 // pred_check_branch
      %38 = sbr.rel (0) target = $region17
    $region16: #{tpu_custom_call.1} parent=1 // pred_region
      %39 = dma.done [#allocation6], 256
    $region17: #{tpu_custom_call.1} parent=1 // pred_fallthru
      _
    %v40 = vld [vmem:[#allocation5] sm:$0xff]
    %v41 = vld [vmem:[#allocation5 + $0x8] sm:$0xff]
    %v42 = vld [vmem:[#allocation2] sm:$0xff]
    %v43 = vld [vmem:[#allocation2 + $0x8] sm:$0xff]
    %vm44 = vcmp.ne.f32.partialorder %v40, 0.0
    %vm45 = vcmp.ne.f32.partialorder %v41, 0.0
    %v46 = vsub.f32 %v42, %v40
    %v47 = vsub.f32 %v43, %v41
    %v48 = vand.u32 2147483647, %v46
    %v49 = vand.u32 2147483647, %v47
    %v50 = vrcp.pop %v40
    %v51 = vmul.f32 %v48, %v50
    %v52 = vrcp.pop %v41
    %v53 = vmul.f32 %v49, %v52
    %v54 = vsel %vm44, %v51, 0.0
    %v55 = vsel %vm45, %v53, 0.0
    %v56 = vsel %vm44, 1.0, 0.0
    %v57 = vsel %vm45, 1.0, 0.0
    %v58 = vadd.f32 %v54, %v55
    %v59 = vadd.f32 %v58, 0.0
    %v60 = vadd.f32 %v56, %v57
    %v61 = vadd.f32 %v60, 0.0
    %62 = vst [vmem:[#allocation7] sm:$0xff] %v59
    %s63 = scalar_lea.vmem [#allocation7], 8
    %64 = vst [vmem:[%s63] sm:$0xff] %v61
    // Predicated region
    $region18: #{tpu_custom_call.1} parent=1 // pred_check
      _
    $region19: #{tpu_custom_call.1} parent=1 // pred_check_branch
      %66 = sbr.rel (0) target = $region21
    $region20: #{tpu_custom_call.1} parent=1 // pred_region
      %s68 = ssub.s32 256, 256
      %69 = vsyncadd [#allocation4], %s68
      %s70 = sshll.u32 [#allocation7], 4
      %s71 = int_to_ptr.vmem [resolvable:$true] %s70
      %76 = dma.vmem_to_hbm [thread:$0]  %s71, 256, %s2, [#allocation4], 128, 128, 8
    $region21: #{tpu_custom_call.1} parent=1 // pred_fallthru
      _
    // Predicated region
    $region22: #{tpu_custom_call.1} parent=1 // pred_check
      _
    $region23: #{tpu_custom_call.1} parent=1 // pred_check_branch
      %78 = sbr.rel (0) target = $region25
    $region24: #{tpu_custom_call.1} parent=1 // pred_region
      %79 = dma.done [#allocation4], 256
    $region25: #{tpu_custom_call.1} parent=1 // pred_fallthru
      _
    %80 = vsyncpa [#allocation3], 1
    %81 = vsyncpa [#allocation6], 1
    %82 = vsyncpa [#allocation4], 1

</llo_original>
